<compile_context>
chip_gen: v7x
topology: tpu7x:2x2x1
jax: 0.10.0
libtpu: 0.0.40
codegen_flags: <defaults>
</compile_context>

<pallas_src>
import jax
import jax.numpy as jnp
from jax.experimental import pallas as pl
from jax.experimental.pallas import tpu as pltpu

LANES = 128            # batch-in-lane width
MAX_TILE_ROWS = 2048   # 2048*128*4 B = 1 MiB per buffer


def _affine_kernel(params_ref, x_ref, o_ref):
    # params_ref: SMEM f32[2] = [a, c] (collapsed weights)
    # x_ref / o_ref: VMEM f32[tile_rows, 128] lane-dense batch slabs.
    o_ref[...] = x_ref[...] * params_ref[0] + params_ref[1]   # single VPU FMA


def _round_up(n, m):
    return -(-n // m) * m


@jax.jit
def regression_model_forward(x, w1, b1, w2, b2):
    """x: [B, 1] f32. w1: [1, hid], b1: [hid], w2: [hid, 1], b2: [1]
    (weights stored as [in, out], i.e. transpose of PyTorch's [out, in]).
    Returns [B, 1] f32 = (x @ w1 + b1) @ w2 + b2."""
    B = x.shape[0]

    # Collapse the two bias-affine layers (no activation between them).
    # NOTE: changes fp32 rounding order vs. the two-layer evaluation, but stays
    # well within 1e-5 of the reference.
    w1f = w1.reshape(-1).astype(jnp.float32)
    w2f = w2.reshape(-1).astype(jnp.float32)
    a = jnp.dot(w1f, w2f)
    c = jnp.dot(b1.reshape(-1).astype(jnp.float32), w2f) + b2.reshape(()).astype(jnp.float32)
    params = jnp.stack([a, c])                     # 2 scalars -> SMEM prefetch

    # Lane-dense layout: [B] -> [rows8, 128]; pad only to the 8x128 boundary.
    rows = pl.cdiv(B, LANES)
    rows8 = _round_up(rows, 8)
    n_pad = rows8 * LANES - B

    xf = x.reshape(-1).astype(jnp.float32)
    if n_pad:
        xf = jnp.pad(xf, (0, n_pad))
    xp = xf.reshape(rows8, LANES)                  # free bitcast when n_pad == 0

    # Tile rows: aim for >= 2 tiles (megacore split on v7x), cap at 1 MiB/buffer.
    tile_rows = min(MAX_TILE_ROWS, max(8, _round_up(pl.cdiv(rows8, 2), 8)))
    num_tiles = pl.cdiv(rows8, tile_rows)          # ragged last block is OK

    out_p = pl.pallas_call(
        _affine_kernel,
        out_shape=jax.ShapeDtypeStruct((rows8, LANES), jnp.float32),
        grid_spec=pltpu.PrefetchScalarGridSpec(
            num_scalar_prefetch=1,
            grid=(num_tiles,),
            in_specs=[pl.BlockSpec((tile_rows, LANES), lambda i, p: (i, 0))],
            out_specs=pl.BlockSpec((tile_rows, LANES), lambda i, p: (i, 0)),
        ),
        compiler_params=pltpu.CompilerParams(
            dimension_semantics=("parallel",)),
        cost_estimate=pl.CostEstimate(
            flops=2 * rows8 * LANES,
            transcendentals=0,
            bytes_accessed=2 * rows8 * LANES * 4),
    )(params, xp)

    if n_pad:
        return out_p.reshape(-1)[:B].reshape(B, 1)
    return out_p.reshape(B, 1)                      # free bitcast


def init_params(key):
    """nn.Linear-shaped params: layer_1 W[3,1] b[3]; layer_2 W[1,3] b[1].
    Stored here as w: [in, out], b: [out]."""
    k1, k2, k3, k4 = jax.random.split(key, 4)
    w1 = jax.random.uniform(k1, (1, 3), jnp.float32, -1.0, 1.0)        # fan_in=1
    b1 = jax.random.uniform(k2, (3,), jnp.float32, -1.0, 1.0)
    bound2 = 1.0 / jnp.sqrt(3.0)
    w2 = jax.random.uniform(k3, (3, 1), jnp.float32, -bound2, bound2)  # fan_in=3
    b2 = jax.random.uniform(k4, (1,), jnp.float32, -bound2, bound2)
    return w1, b1, w2, b2


def _reference(x, w1, b1, w2, b2):
    return (x @ w1 + b1[None, :]) @ w2 + b2[None, :]


if __name__ == "__main__":
    key = jax.random.PRNGKey(0)
    kx, kx2, kx3, kp = jax.random.split(key, 4)
    w1, b1, w2, b2 = init_params(kp)

    # Small batch (single 8x128 tile, mostly padding).
    B = 8
    x = jax.random.normal(kx, (B, 1), jnp.float32)
    out = jax.block_until_ready(regression_model_forward(x, w1, b1, w2, b2))
    ref = _reference(x, w1, b1, w2, b2)
    assert out.shape == (B, 1)
    assert jnp.allclose(out, ref, atol=1e-5, rtol=1e-5), (out, ref)

    # Batch that needs lane padding (1000 -> 8 rows x 128 lanes).
    B2 = 1000
    x2 = jax.random.normal(kx2, (B2, 1), jnp.float32)
    out2 = jax.block_until_ready(regression_model_forward(x2, w1, b1, w2, b2))
    ref2 = _reference(x2, w1, b1, w2, b2)
    assert out2.shape == (B2, 1)
    assert jnp.allclose(out2, ref2, atol=1e-5, rtol=1e-5)

    # Pad-free path (B % 1024 == 0) with 2 tiles -> exercises megacore split.
    B3 = 4096
    x3 = jax.random.normal(kx3, (B3, 1), jnp.float32)
    out3 = jax.block_until_ready(regression_model_forward(x3, w1, b1, w2, b2))
    ref3 = _reference(x3, w1, b1, w2, b2)
    assert out3.shape == (B3, 1)
    assert jnp.allclose(out3, ref3, atol=1e-5, rtol=1e-5)

    print("KERNEL_OK")
</pallas_src>

<mosaic_0001>
module attributes {stable_mosaic.version = 11 : i64} {
  func.func @_affine_kernel(%arg0: i32, %arg1: memref<2xf32, #tpu.memory_space<smem>>, %arg2: memref<8x128xf32, #tpu.memory_space<vmem>>, %arg3: memref<8x128xf32, #tpu.memory_space<vmem>>) attributes {dimension_semantics = [#tpu.dimension_semantics<parallel>], iteration_bounds = array<i64: 1>, scalar_prefetch = 1 : i64, scratch_operands = 0 : i64, tpu.core_type = #tpu.core_type<tc>, window_params = [{transform_indices = @transform_0, window_bounds = array<i64: 8, 128>}, {transform_indices = @transform_1, window_bounds = array<i64: 8, 128>}]} {
    %c0 = arith.constant 0 : index
    %c0_0 = arith.constant 0 : index
    %0 = vector.load %arg2[%c0, %c0_0] : memref<8x128xf32, #tpu.memory_space<vmem>>, vector<8x128xf32>
    %c0_1 = arith.constant 0 : index
    %1 = memref.load %arg1[%c0_1] : memref<2xf32, #tpu.memory_space<smem>>
    %2 = vector.broadcast %1 : f32 to vector<8x128xf32>
    %3 = arith.mulf %0, %2 : vector<8x128xf32>
    %c1 = arith.constant 1 : index
    %4 = memref.load %arg1[%c1] : memref<2xf32, #tpu.memory_space<smem>>
    %5 = vector.broadcast %4 : f32 to vector<8x128xf32>
    %6 = arith.addf %3, %5 : vector<8x128xf32>
    %c0_2 = arith.constant 0 : index
    %c0_3 = arith.constant 0 : index
    %7 = vector.load %arg3[%c0_2, %c0_3] : memref<8x128xf32, #tpu.memory_space<vmem>>, vector<8x128xf32>
    tpu.vector_store %arg3[%c0_2, %c0_3], %6 {strides = array<i32>} : memref<8x128xf32, #tpu.memory_space<vmem>>, vector<8x128xf32>,
    return
  }
  func.func @transform_0(%arg0: i32, %arg1: memref<2xf32, #tpu.memory_space<smem>>) -> (i32, i32) {
    %c0_i32 = arith.constant 0 : i32
    %c0_i32_0 = arith.constant 0 : i32
    return %arg0, %c0_i32 : i32, i32
  }
  func.func @transform_1(%arg0: i32, %arg1: memref<2xf32, #tpu.memory_space<smem>>) -> (i32, i32) {
    %c0_i32 = arith.constant 0 : i32
    %c0_i32_0 = arith.constant 0 : i32
    return %arg0, %c0_i32 : i32, i32
  }
}

</mosaic_0001>

<llo_original>
// kernel: regression_model_forward.1
$region0: #{regression_model_forward.1}
  #allocation0 [shape = 'u32[]', space=smem, size = 0x4, offset = 0x4, fixed_abs, tag = 'smem constant byte address 0x4 - core index']
  #allocation1 [shape = 'u32[144,128]{1,0:T(1,128)}', space=vmem, size = 0x12000, scoped, tag = 'internal scratch']
  #allocation2 [shape = 's32[1]{0}', space=sflag, size = 0x4, scoped, tag = 'scoped memory for regression_model_forward.1']
  #allocation3 [shape = 'u8[512]{0}', space=smem, size = 0x200, scoped, tag = 'prefetched SMEM operand 0']
  %s0 = inlined_call_operand.vmem [shape: f32[2], index: 0, kind: input, shape index: {}]
  %s1 = inlined_call_operand.vmem [shape: f32[8,128], index: 1, kind: input, shape index: {}]
  %s2 = inlined_call_operand.vmem [shape: f32[8,128], index: 2, kind: output, shape index: {}]
  %s3 = sld [smem:[#allocation0]]
  $region14: #{regression_model_forward.1} parent=0
    _
  %s5 = ssub.s32 1, %s3
  %s6 = scalar_select 0, %s5, %s3
  %s7 = sshll.u32 %s0, 4
  %s8 = int_to_ptr.vmem [resolvable:$true] %s7
  %10 = dma.vmem_to_smem %s8, 16, [#allocation3], [#allocation2]
  %11 = dma.done [#allocation2], 16
  %12 = sfence
  // Predicated region
  $region2: #{regression_model_forward.1} parent=0 // pred_check
    _
  $region3: #{regression_model_forward.1} parent=0 // pred_check_branch
    %14 = sbr.rel (0) target = $region5
  $region4: #{regression_model_forward.1} parent=0 // pred_region
    _
  $region5: #{regression_model_forward.1} parent=0 // pred_fallthru
    _
  %v15 = vld [vmem:[%s1] sm:$0xff]
  %s16 = sld [smem:[#allocation3]]
  %v17 = vstv %s16
  %v18 = vmul.f32 %v15, %v17
  %s19 = sld [smem:[#allocation3 + $0x1]]
  %v20 = vstv %s19
  %v21 = vadd.f32 %v18, %v20
  %22 = vst [vmem:[%s2] sm:$0xff] %v21
  // Predicated region
  $region6: #{regression_model_forward.1} parent=0 // pred_check
    _
  $region7: #{regression_model_forward.1} parent=0 // pred_check_branch
    %24 = sbr.rel (0) target = $region9
  $region8: #{regression_model_forward.1} parent=0 // pred_region
    _
  $region9: #{regression_model_forward.1} parent=0 // pred_fallthru
    _
  // Predicated region
  $region10: #{regression_model_forward.1} parent=0 // pred_check
    _
  $region11: #{regression_model_forward.1} parent=0 // pred_check_branch
    %26 = sbr.rel (0) target = $region13
  $region12: #{regression_model_forward.1} parent=0 // pred_region
    _
  $region13: #{regression_model_forward.1} parent=0 // pred_fallthru
    _

</llo_original>
